<compile_context>
chip_gen: v5e
topology: v5e:2x2
jax: 0.10.0
libtpu: 0.0.40
codegen_flags: <defaults>
</compile_context>

<pallas_src>
import jax
import jax.numpy as jnp
from jax.experimental import pallas as pl
from jax.experimental.pallas import tpu as pltpu


def _audio_norm_kernel(inv_ref, x_ref, o_ref):
    # inv_ref: SMEM (1, 1) f32 holding 1/b; x_ref / o_ref: VMEM tiles.
    inv_b = inv_ref[0, 0]
    x = x_ref[...].astype(jnp.float32)            # widen on-vreg, hidden under DMA
    o_ref[...] = (x * inv_b).astype(o_ref.dtype)  # scalar-reciprocal multiply


def _round_up(v: int, m: int) -> int:
    return -(-v // m) * m


# Lane-dense slab widths to try (largest first); all multiples of the 128-lane
# vreg width so stores stay unmasked.
_WIDTH_CANDIDATES = (1024, 896, 768, 640, 512, 384, 256, 128)


def audio_16bit_norm(
    x: jax.Array,
    b,
    *,
    min_pallas_bytes: int = 256 * 1024,
    target_block_bytes: int = 8 * 1024 * 1024,
    donate: bool = False,
) -> jax.Array:
    """x / b with b a scalar registered buffer (Audio16BitNorm.forward)."""
    orig_shape = x.shape
    b_arr = jnp.asarray(b)

    out_dtype = jnp.result_type(x.dtype, b_arr.dtype)
    if not jnp.issubdtype(out_dtype, jnp.inexact):
        out_dtype = jnp.float32  # torch true-division promotes ints to float

    def _xla_fallback():
        return jnp.true_divide(x, b_arr).astype(out_dtype)

    # TODO(synk): non-scalar (broadcasting) `b` buffers use the XLA fallback;
    # the typical registered buffer is a single scalar (e.g. 32768.0).
    if b_arr.size != 1:
        return _xla_fallback()

    total = 1
    for d in orig_shape:
        total *= d
    if total == 0:
        return jnp.zeros(orig_shape, out_dtype)

    in_itemsize = jnp.dtype(x.dtype).itemsize
    out_itemsize = jnp.dtype(out_dtype).itemsize

    # Tiny inputs: pallas_call fixed cost dominates; XLA is already at roofline.
    if total * max(in_itemsize, out_itemsize) < min_pallas_bytes:
        return _xla_fallback()

    # Widest lane-dense width that divides the element count exactly, so the
    # 1-D -> 2-D reshape is a free bitcast (no jnp.pad / slice copies).
    width = next((w for w in _WIDTH_CANDIDATES if total % w == 0), None)
    if width is None:
        # Element count not a multiple of 128 lanes: plain XLA beats paying
        # pad + slice full-array copies around the kernel.
        return _xla_fallback()

    rows = total // width
    row_bytes = width * max(in_itemsize, out_itemsize)

    # ~8 MiB blocks: per-step fixed cost (~0.35 us) stays <5% of each block's
    # DMA time even on v7x; 2 x (in + out) double-buffered blocks <= ~32 MiB.
    tile_rows = max(8, (target_block_bytes // row_bytes) // 8 * 8)
    # Megacore-friendly: prefer >= 4 grid steps (>= 2 blocks per TensorCore on
    # dual-core chips) but never shrink a block below ~1 MiB to get there.
    if rows > tile_rows and pl.cdiv(rows, tile_rows) < 4:
        min_block = min(target_block_bytes, 1024 * 1024)
        min_rows = max(8, (min_block // row_bytes) // 8 * 8)
        quarter = _round_up(pl.cdiv(rows, 4), 8)
        tile_rows = min(tile_rows, max(min_rows, quarter))
    tile_rows = min(tile_rows, rows)        # full-dim block for small row counts

    grid = (pl.cdiv(rows, tile_rows),)      # uneven tail -> masked partial block

    x2d = jnp.ravel(x).reshape(rows, width)  # free bitcast views, no copy
    inv_b = (jnp.float32(1.0) / b_arr.reshape(()).astype(jnp.float32)).reshape(1, 1)

    # Only alias the output onto the input when the caller actually donates x;
    # aliasing a live buffer makes XLA insert a defensive full copy.
    io_aliases = {1: 0} if (donate and x2d.dtype == jnp.dtype(out_dtype)) else {}

    out2d = pl.pallas_call(
        _audio_norm_kernel,
        out_shape=jax.ShapeDtypeStruct((rows, width), out_dtype),
        grid_spec=pltpu.PrefetchScalarGridSpec(
            num_scalar_prefetch=0,
            grid=grid,
            in_specs=[
                pl.BlockSpec(memory_space=pltpu.SMEM),               # 1/b scalar
                pl.BlockSpec((tile_rows, width), lambda i: (i, 0)),  # x tile
            ],
            out_specs=pl.BlockSpec((tile_rows, width), lambda i: (i, 0)),
        ),
        input_output_aliases=io_aliases,
        compiler_params=pltpu.CompilerParams(
            dimension_semantics=("parallel",),
            vmem_limit_bytes=48 * 1024 * 1024,
        ),
    )(inv_b, x2d)

    return out2d.reshape(orig_shape)


if __name__ == "__main__":
    key = jax.random.PRNGKey(0)
    b = jnp.float32(32768.0)  # deterministic buffer: 16-bit full-scale

    # 1) Small NCHW-like input, forced through the Pallas path.
    x1 = jax.random.randint(key, (2, 4, 16, 16), -32768, 32768).astype(jnp.float32)
    y1 = jax.block_until_ready(audio_16bit_norm(x1, b, min_pallas_bytes=0))
    assert y1.shape == x1.shape and y1.dtype == jnp.float32
    assert jnp.allclose(y1, x1 / b, rtol=1e-6, atol=1e-7), "mismatch (small)"

    # 2) Aligned audio-style input exercising a multi-step grid with a partial
    #    (masked) last row-block.
    k2, k3 = jax.random.split(key)
    x2 = jax.random.randint(k2, (2, 8064), -32768, 32768).astype(jnp.float32)
    y2 = jax.block_until_ready(
        audio_16bit_norm(x2, b, min_pallas_bytes=0, target_block_bytes=64 * 1024))
    assert jnp.allclose(y2, x2 / b, rtol=1e-6, atol=1e-7), "mismatch (partial block)"

    # 3) Lane-unaligned length -> plain-XLA fallback (no pad/slice copies).
    x3 = jax.random.randint(k3, (2, 16001), -32768, 32768).astype(jnp.float32)
    y3 = jax.block_until_ready(audio_16bit_norm(x3, b))
    assert jnp.allclose(y3, x3 / b, rtol=1e-6, atol=1e-7), "mismatch (fallback)"

    print("KERNEL_OK")
</pallas_src>

<mosaic_0001>
module attributes {stable_mosaic.version = 11 : i64} {
  func.func @_audio_norm_kernel(%arg0: i32, %arg1: memref<1x1xf32, #tpu.memory_space<smem>>, %arg2: memref<2x1024xf32, #tpu.memory_space<vmem>>, %arg3: memref<2x1024xf32, #tpu.memory_space<vmem>>) attributes {dimension_semantics = [#tpu.dimension_semantics<parallel>], iteration_bounds = array<i64: 1>, scalar_prefetch = 0 : i64, scratch_operands = 0 : i64, tpu.core_type = #tpu.core_type<tc>, window_params = [{transform_indices = @transform_0, window_bounds = array<i64: 1, 1>}, {transform_indices = @transform_1, window_bounds = array<i64: 2, 1024>}, {transform_indices = @transform_2, window_bounds = array<i64: 2, 1024>}]} {
    %c0 = arith.constant 0 : index
    %c0_0 = arith.constant 0 : index
    %0 = memref.load %arg1[%c0, %c0_0] : memref<1x1xf32, #tpu.memory_space<smem>>
    %c0_1 = arith.constant 0 : index
    %c0_2 = arith.constant 0 : index
    %1 = vector.load %arg2[%c0_1, %c0_2] : memref<2x1024xf32, #tpu.memory_space<vmem>>, vector<2x1024xf32>
    %2 = vector.broadcast %0 : f32 to vector<2x1024xf32>
    %3 = arith.mulf %1, %2 : vector<2x1024xf32>
    %c0_3 = arith.constant 0 : index
    %c0_4 = arith.constant 0 : index
    %4 = vector.load %arg3[%c0_3, %c0_4] : memref<2x1024xf32, #tpu.memory_space<vmem>>, vector<2x1024xf32>
    tpu.vector_store %arg3[%c0_3, %c0_4], %3 {strides = array<i32>} : memref<2x1024xf32, #tpu.memory_space<vmem>>, vector<2x1024xf32>,
    return
  }
  func.func @transform_0(%arg0: i32) -> (i32, i32) {
    %c0_i32 = arith.constant 0 : i32
    %c0_i32_0 = arith.constant 0 : i32
    %c0_i32_1 = arith.constant 0 : i32
    return %c0_i32, %c0_i32_0 : i32, i32
  }
  func.func @transform_1(%arg0: i32) -> (i32, i32) {
    %c0_i32 = arith.constant 0 : i32
    %c0_i32_0 = arith.constant 0 : i32
    return %arg0, %c0_i32 : i32, i32
  }
  func.func @transform_2(%arg0: i32) -> (i32, i32) {
    %c0_i32 = arith.constant 0 : i32
    %c0_i32_0 = arith.constant 0 : i32
    return %arg0, %c0_i32 : i32, i32
  }
}

</mosaic_0001>

<llo_original>
// kernel: tpu_custom_call.1
$region0: #{tpu_custom_call.1}
  #allocation0 [shape = 'u32[]', space=smem, size = 0x4, offset = 0x4, fixed_abs, tag = 'smem constant byte address 0x4 - core index']
  #allocation1 [shape = 'u32[72,128]{1,0:T(1,128)}', space=vmem, size = 0x9000, scoped, tag = 'internal scratch']
  #allocation2 [shape = 'f32[1,1]{1,0:T(1,128)S(6)}', space=smem, size = 0x200, scoped, tag = 'scoped memory for tpu_custom_call.1']
  %s0 = inlined_call_operand.<no memory space> [shape: f32[1,1], index: 0, kind: input, shape index: {}]
  %s1 = inlined_call_operand.hbm [shape: f32[2,1024], index: 1, kind: input, shape index: {}]
  %s2 = inlined_call_operand.hbm [shape: f32[2,1024], index: 2, kind: output, shape index: {}]
  %s3 = sld [smem:[#allocation0]]
  $region22: #{tpu_custom_call.1} parent=0
    _
  %s5 = ssub.s32 1, %s3
  %s6 = scalar_select 0, %s5, %s3
  %7 = sst [smem:[#allocation2]] %s0
  $region1: #{tpu_custom_call.1} parent=0
    #allocation3 [shape = 'u8[8192]{0}', space=vmem, size = 0x2000, scoped, tag = 'input window, operand 1, single buffered']
    #allocation4 [shape = 's32[1]{0}', space=sflag, size = 0x4, scoped, tag = 'scoped memory for tpu_custom_call.1']
    #allocation5 [shape = 's32[1]{0}', space=sflag, size = 0x4, scoped, tag = 'scoped memory for tpu_custom_call.1']
    #allocation6 [shape = 'u8[8192]{0}', space=vmem, size = 0x2000, scoped, tag = 'output window, operand 0, single buffered']
    %8 = vsyncpa [#allocation4], 0
    %9 = vsyncpa [#allocation5], 0
    // Predicated region
    $region2: #{tpu_custom_call.1} parent=1 // pred_check
      _
    $region3: #{tpu_custom_call.1} parent=1 // pred_check_branch
      %11 = sbr.rel (0) target = $region5
    $region4: #{tpu_custom_call.1} parent=1 // pred_region
      _
    $region5: #{tpu_custom_call.1} parent=1 // pred_fallthru
      _
    // Predicated region
    $region6: #{tpu_custom_call.1} parent=1 // pred_check
      _
    $region7: #{tpu_custom_call.1} parent=1 // pred_check_branch
      %13 = sbr.rel (0) target = $region9
    $region8: #{tpu_custom_call.1} parent=1 // pred_region
      %15 = vsyncadd [#allocation4], 0
      %s17 = sshll.u32 %s1, 4
      %s18 = int_to_ptr.hbm [resolvable:$true] %s17
      %s19 = sshll.u32 [#allocation3], 4
      %s20 = int_to_ptr.vmem [resolvable:$true] %s19
      %22 = dma.hbm_to_vmem [thread:$0]  %s18, 256, %s20, [#allocation4]
    $region9: #{tpu_custom_call.1} parent=1 // pred_fallthru
      _
    // Predicated region
    $region10: #{tpu_custom_call.1} parent=1 // pred_check
      _
    $region11: #{tpu_custom_call.1} parent=1 // pred_check_branch
      %24 = sbr.rel (0) target = $region13
    $region12: #{tpu_custom_call.1} parent=1 // pred_region
      %26 = dma.done [#allocation4], 256
    $region13: #{tpu_custom_call.1} parent=1 // pred_fallthru
      _
    %s27 = sld [smem:[#allocation2]]
    %v28 = vld [vmem:[#allocation3] sm:$0xff]
    %v29 = vld [vmem:[#allocation3 + $0x8] sm:$0xff]
    %v30 = vstv %s27
    %v31 = vmul.f32 %v28, %v30
    %v32 = vmul.f32 %v29, %v30
    %33 = vst [vmem:[#allocation6] sm:$0xff] %v31
    %34 = vst [vmem:[#allocation6 + $0x8] sm:$0xff] %v32
    // Predicated region
    $region14: #{tpu_custom_call.1} parent=1 // pred_check
      _
    $region15: #{tpu_custom_call.1} parent=1 // pred_check_branch
      %36 = sbr.rel (0) target = $region17
    $region16: #{tpu_custom_call.1} parent=1 // pred_region
      %38 = vsyncadd [#allocation5], 0
      %s40 = sshll.u32 [#allocation6], 4
      %s41 = int_to_ptr.vmem [resolvable:$true] %s40
      %s42 = sshll.u32 %s2, 4
      %s43 = int_to_ptr.hbm [resolvable:$true] %s42
      %45 = dma.vmem_to_hbm [thread:$0]  %s41, 256, %s43, [#allocation5]
    $region17: #{tpu_custom_call.1} parent=1 // pred_fallthru
      _
    // Predicated region
    $region18: #{tpu_custom_call.1} parent=1 // pred_check
      _
    $region19: #{tpu_custom_call.1} parent=1 // pred_check_branch
      %47 = sbr.rel (0) target = $region21
    $region20: #{tpu_custom_call.1} parent=1 // pred_region
      %49 = dma.done [#allocation5], 256
    $region21: #{tpu_custom_call.1} parent=1 // pred_fallthru
      _
    %50 = vsyncpa [#allocation4], 1
    %51 = vsyncpa [#allocation5], 1

</llo_original>
